<compile_context>
chip_gen: v6e
topology: v6e:2x2x1
jax: 0.10.0
libtpu: 0.0.40
codegen_flags: <defaults>
</compile_context>

<pallas_src>
import math

import jax
import jax.numpy as jnp
from jax.experimental import pallas as pl
from jax.experimental.pallas import tpu as pltpu


_LANE = 128
_SUBLANE = 8
_BLOCK_BYTES_TARGET = 2 << 20  # ~2 MiB per block


def _reshape_copy_kernel(x_ref, o_ref):
    # Identity copy of one lane-dense tile.  The reshape itself is metadata,
    # handled in the wrapper; element order is preserved (row-major == .view).
    o_ref[...] = x_ref[...]


def _choose_2d(total):
    """Lane-dense (rows, cols) factorization of the flat element count."""
    candidates = (4096, 2048, 1024, 512, 256, 128)
    # Prefer a factorization that is also sublane-aligned (rows % 8 == 0).
    for cols in candidates:
        if total % cols == 0 and (total // cols) % _SUBLANE == 0:
            return total // cols, cols
    # Next best: lane-aligned cols, any row count.
    for cols in candidates:
        if total % cols == 0:
            return total // cols, cols
    # Not a multiple of 128: fall back to a single full-width row
    # (block == full array dims, which is always a legal BlockSpec).
    return 1, total


def _choose_block_rows(rows, cols, itemsize):
    """Largest row block dividing `rows`, ~<= 2 MiB, sublane-aligned if possible."""
    if rows <= _SUBLANE:
        return rows
    max_rows = max(_SUBLANE, _BLOCK_BYTES_TARGET // max(1, cols * itemsize))
    max_rows = min(rows, max_rows)
    # Preferred: sublane-aligned block that divides rows.
    best = None
    for cand in range(_SUBLANE, max_rows + 1, _SUBLANE):
        if rows % cand == 0:
            best = cand
    if best is not None:
        return best
    # Fallback: any divisor of rows within the VMEM budget.
    for cand in range(max_rows, 0, -1):
        if rows % cand == 0:
            return cand
    return rows


def reshape_layer(x, shape):
    """Pallas implementation of ReshapeLayer.forward: x.view(-1, *shape)."""
    shape = tuple(int(s) for s in shape)
    total = int(math.prod(x.shape))
    tail = int(math.prod(shape)) if shape else 1
    if tail <= 0 or total % tail != 0:
        raise ValueError(f"cannot view {x.shape} as (-1, {shape})")
    out_shape = (total // tail,) + shape

    itemsize = jnp.dtype(x.dtype).itemsize
    rows, cols = _choose_2d(total)
    block_rows = _choose_block_rows(rows, cols, itemsize)
    grid = (rows // block_rows,)

    x2d = jnp.reshape(x, (rows, cols))  # metadata-only (row-major)

    out2d = pl.pallas_call(
        _reshape_copy_kernel,
        out_shape=jax.ShapeDtypeStruct((rows, cols), x.dtype),
        grid_spec=pltpu.PrefetchScalarGridSpec(
            num_scalar_prefetch=0,
            grid=grid,
            in_specs=[pl.BlockSpec((block_rows, cols), lambda i: (i, 0))],
            out_specs=pl.BlockSpec((block_rows, cols), lambda i: (i, 0)),
        ),
        compiler_params=pltpu.CompilerParams(
            dimension_semantics=("parallel",)),
        cost_estimate=pl.CostEstimate(
            flops=0,
            transcendentals=0,
            bytes_accessed=2 * total * itemsize),
    )(x2d)

    return jnp.reshape(out2d, out_shape)  # metadata-only (row-major)


if __name__ == "__main__":
    key = jax.random.PRNGKey(0)

    # ReshapeLayer(shape=(4, 16, 16)) applied to a (batch=2, features=1024)
    # input -> (2, 4, 16, 16), matching torch's x.view(-1, 4, 16, 16).
    target_shape = (4, 16, 16)
    x = jax.random.normal(key, (2, 1024), dtype=jnp.float32)

    out = reshape_layer(x, target_shape)
    out = jax.block_until_ready(out)

    ref = jnp.reshape(x, (-1,) + target_shape)
    assert out.shape == (2, 4, 16, 16), out.shape
    assert bool(jnp.array_equal(out, ref)), "mismatch vs reference"

    print("KERNEL_OK")
</pallas_src>

<mosaic_0001>
module attributes {stable_mosaic.version = 11 : i64} {
  func.func @_reshape_copy_kernel(%arg0: i32, %arg1: memref<8x256xf32, #tpu.memory_space<vmem>>, %arg2: memref<8x256xf32, #tpu.memory_space<vmem>>) attributes {dimension_semantics = [#tpu.dimension_semantics<parallel>], iteration_bounds = array<i64: 1>, scalar_prefetch = 0 : i64, scratch_operands = 0 : i64, tpu.core_type = #tpu.core_type<tc>, window_params = [{transform_indices = @transform_0, window_bounds = array<i64: 8, 256>}, {transform_indices = @transform_1, window_bounds = array<i64: 8, 256>}]} {
    %c0 = arith.constant 0 : index
    %c0_0 = arith.constant 0 : index
    %0 = vector.load %arg1[%c0, %c0_0] : memref<8x256xf32, #tpu.memory_space<vmem>>, vector<8x256xf32>
    %c0_1 = arith.constant 0 : index
    %c0_2 = arith.constant 0 : index
    %1 = vector.load %arg2[%c0_1, %c0_2] : memref<8x256xf32, #tpu.memory_space<vmem>>, vector<8x256xf32>
    tpu.vector_store %arg2[%c0_1, %c0_2], %0 {strides = array<i32>} : memref<8x256xf32, #tpu.memory_space<vmem>>, vector<8x256xf32>,
    return
  }
  func.func @transform_0(%arg0: i32) -> (i32, i32) {
    %c0_i32 = arith.constant 0 : i32
    %c0_i32_0 = arith.constant 0 : i32
    return %arg0, %c0_i32 : i32, i32
  }
  func.func @transform_1(%arg0: i32) -> (i32, i32) {
    %c0_i32 = arith.constant 0 : i32
    %c0_i32_0 = arith.constant 0 : i32
    return %arg0, %c0_i32 : i32, i32
  }
}

</mosaic_0001>

<llo_original>
// kernel: tpu_custom_call.1
$region0: #{tpu_custom_call.1}
  #allocation0 [shape = 'u32[]', space=smem, size = 0x4, offset = 0x4, fixed_abs, tag = 'smem constant byte address 0x4 - core index']
  #allocation1 [shape = 'u32[144,128]{1,0:T(1,128)}', space=vmem, size = 0x12000, scoped, tag = 'internal scratch']
  %s0 = inlined_call_operand.hbm [shape: f32[8,256], index: 0, kind: input, shape index: {}]
  %s1 = inlined_call_operand.hbm [shape: f32[8,256], index: 1, kind: output, shape index: {}]
  %s2 = sld [smem:[#allocation0]]
  $region18: #{tpu_custom_call.1} parent=0
    _
  %s4 = ssub.s32 1, %s2
  %s5 = scalar_select 0, %s4, %s2
  $region1: #{tpu_custom_call.1} parent=0
    #allocation2 [shape = 'u8[8192]{0}', space=vmem, size = 0x2000, scoped, tag = 'input window, operand 0, single buffered']
    #allocation3 [shape = 's32[1]{0}', space=sflag, size = 0x4, scoped, tag = 'scoped memory for tpu_custom_call.1']
    #allocation4 [shape = 's32[1]{0}', space=sflag, size = 0x4, scoped, tag = 'scoped memory for tpu_custom_call.1']
    #allocation5 [shape = 'u8[8192]{0}', space=vmem, size = 0x2000, scoped, tag = 'output window, operand 0, single buffered']
    %6 = vsyncpa [#allocation3], 0
    %7 = vsyncpa [#allocation4], 0
    // Predicated region
    $region2: #{tpu_custom_call.1} parent=1 // pred_check
      _
    $region3: #{tpu_custom_call.1} parent=1 // pred_check_branch
      %9 = sbr.rel (0) target = $region5
    $region4: #{tpu_custom_call.1} parent=1 // pred_region
      %s11 = ssub.s32 256, 256
      %12 = vsyncadd [#allocation3], %s11
      %s14 = sshll.u32 [#allocation2], 4
      %s15 = int_to_ptr.vmem [resolvable:$true] %s14
      %17 = dma.hbm_to_vmem [thread:$0]  %s0, 256, %s15, [#allocation3]
    $region5: #{tpu_custom_call.1} parent=1 // pred_fallthru
      _
    // Predicated region
    $region6: #{tpu_custom_call.1} parent=1 // pred_check
      _
    $region7: #{tpu_custom_call.1} parent=1 // pred_check_branch
      %19 = sbr.rel (0) target = $region9
    $region8: #{tpu_custom_call.1} parent=1 // pred_region
      %20 = dma.done [#allocation3], 256
    $region9: #{tpu_custom_call.1} parent=1 // pred_fallthru
      _
    %v21 = vld [vmem:[#allocation2] sm:$0xff]
    %v22 = vld [vmem:[#allocation2 + $0x8] sm:$0xff]
    %23 = vst [vmem:[#allocation5] sm:$0xff] %v21
    %24 = vst [vmem:[#allocation5 + $0x8] sm:$0xff] %v22
    // Predicated region
    $region10: #{tpu_custom_call.1} parent=1 // pred_check
      _
    $region11: #{tpu_custom_call.1} parent=1 // pred_check_branch
      %26 = sbr.rel (0) target = $region13
    $region12: #{tpu_custom_call.1} parent=1 // pred_region
      %s28 = ssub.s32 256, 256
      %29 = vsyncadd [#allocation4], %s28
      %s31 = sshll.u32 [#allocation5], 4
      %s32 = int_to_ptr.vmem [resolvable:$true] %s31
      %34 = dma.vmem_to_hbm [thread:$0]  %s32, 256, %s1, [#allocation4]
    $region13: #{tpu_custom_call.1} parent=1 // pred_fallthru
      _
    // Predicated region
    $region14: #{tpu_custom_call.1} parent=1 // pred_check
      _
    $region15: #{tpu_custom_call.1} parent=1 // pred_check_branch
      %36 = sbr.rel (0) target = $region17
    $region16: #{tpu_custom_call.1} parent=1 // pred_region
      %37 = dma.done [#allocation4], 256
    $region17: #{tpu_custom_call.1} parent=1 // pred_fallthru
      _
    %38 = vsyncpa [#allocation3], 1
    %39 = vsyncpa [#allocation4], 1

</llo_original>
